<compile_context>
chip_gen: v5e
topology: v5e:2x2
jax: 0.10.0
libtpu: 0.0.40
codegen_flags: <defaults>
</compile_context>

<pallas_src>
import jax
import jax.numpy as jnp
from jax.experimental import pallas as pl
from jax.experimental.pallas import tpu as pltpu


LANE = 128  # pad feature/class dims to full vreg lanes


# ----------------------------- Pallas kernel -------------------------------- #
def finetuned_kernel(patch_ref, wconv_ref, bconv_ref, pool_ref, wfc_ref, out_ref):
    # patch_ref : (1, Bblk*HWt, K9C)  bf16 im2col rows for this (batch, hw) tile
    # wconv_ref : (K9C, Fp)           bf16 conv weights as a matmul
    # bconv_ref : (1, Fp)             f32  conv bias
    # pool_ref  : (Bblk, Bblk*HWt)    f32  per-sample row-sum selector
    # wfc_ref   : (Fp, NCp)           bf16 fc weights, pre-scaled by 1/HW
    # out_ref   : (1, Bblk, NCp)      f32  partial logits for this hw tile
    patches = patch_ref[0]                                              # (M, K9C) bf16
    feat = jnp.dot(patches, wconv_ref[...],
                   preferred_element_type=jnp.float32)                  # conv: bf16 MXU, f32 acc
    feat = jnp.maximum(feat + bconv_ref[...], 0.0)                      # bias + ReLU, f32 VPU
    pooled = jnp.dot(pool_ref[...], feat,
                     preferred_element_type=jnp.float32)                # per-sample partial sums (MXU)
    partial = jnp.dot(pooled.astype(jnp.bfloat16), wfc_ref[...],
                      preferred_element_type=jnp.float32)               # Linear (1/HW pre-folded)
    out_ref[0] = partial


# ------------------------------ helpers -------------------------------------- #
def _round_up(n, m):
    return ((n + m - 1) // m) * m


def _pad_axis(x, target, axis):
    pad = target - x.shape[axis]
    if pad <= 0:
        return x
    widths = [(0, 0)] * x.ndim
    widths[axis] = (0, pad)
    return jnp.pad(x, widths)


def im2col_3x3(x_nhwc):
    """3x3, stride 1, pad 1 patches.  Returns (B, H*W, 9*C)."""
    B, H, W, C = x_nhwc.shape
    xp = jnp.pad(x_nhwc, ((0, 0), (1, 1), (1, 1), (0, 0)))
    cols = []
    for dh in range(3):
        for dw in range(3):
            cols.append(xp[:, dh:dh + H, dw:dw + W, :])
    return jnp.concatenate(cols, axis=-1).reshape(B, H * W, 9 * C)


def _pick_hw_tile(HW, Bblk, k9c, fp, target_steps=4, vmem_budget=8 << 20):
    """Largest hw tile that divides HW, is sublane-aligned, keeps the per-step
    working set inside a budget safe on every TPU generation (v7x: 64 MiB
    physical VMEM), and leaves >= target_steps grid steps for pipelining and
    v7x dual-TensorCore sharding."""
    if HW % 8 != 0:
        return HW                                        # full-extent fallback
    divisors = [t for t in range(8, HW + 1, 8) if HW % t == 0]

    def fits(t):
        rows = Bblk * t
        patch_bytes = 2 * rows * k9c * 2                 # bf16 block, double-buffered
        feat_bytes = rows * fp * 4                       # f32 conv/ReLU intermediate
        return patch_bytes + feat_bytes <= vmem_budget

    ok = [t for t in divisors if fits(t)] or [8]
    pipelined = [t for t in ok if HW // t >= target_steps]
    return max(pipelined) if pipelined else max(ok)


# ------------------------------ JAX wrapper ----------------------------------- #
def finetuned_forward(x_nchw, params, *, batch_block=8, hw_tile=None):
    """Forward pass of FineTunedModel.  x_nchw: (B, C, H, W) float32."""
    B, C, H, W = x_nchw.shape
    HW = H * W
    K9C = 9 * C
    F = params["w_conv"].shape[1]
    NC = params["w_fc"].shape[0]

    Fp = _round_up(F, LANE)
    NCp = _round_up(NC, LANE)

    # Batch block: full batch at small B (block == full dim), else a multiple
    # of 8 so pooled / output blocks stay sublane-aligned.
    if B <= 8:
        Bblk = B
    else:
        Bblk = max(8, (min(batch_block, B) // 8) * 8)
    Bpad = _round_up(B, Bblk)
    n_bblocks = Bpad // Bblk

    if hw_tile is None:
        hw_tile = _pick_hw_tile(HW, Bblk, K9C, Fp)
    assert HW % hw_tile == 0
    n_hw = HW // hw_tile
    Mblk = Bblk * hw_tile                                # matmul rows per grid step

    # --- trace-time glue (XLA): layout + im2col in bf16; NO lane padding of K.
    x_nhwc = jnp.transpose(x_nchw, (0, 2, 3, 1)).astype(jnp.bfloat16)
    patches = im2col_3x3(x_nhwc)                         # (B, HW, 9C) bf16
    patches = _pad_axis(patches, Bpad, axis=0)           # (Bpad, HW, 9C)
    # Pre-tile so every grid step sees a ready-made 2-D (Mblk, 9C) slab; rows
    # within a block are ordered sample-major (s * hw_tile + r).
    patches = patches.reshape(n_bblocks, Bblk, n_hw, hw_tile, K9C)
    patches = jnp.transpose(patches, (2, 0, 1, 3, 4)).reshape(n_hw, Bpad * hw_tile, K9C)

    w_conv = _pad_axis(params["w_conv"], Fp, 1).astype(jnp.bfloat16)       # (9C, Fp)
    b_conv = _pad_axis(params["b_conv"], Fp, 1)                            # (1, Fp) f32
    # nn.Linear stores W as (num_classes, input_dim); y = x @ W.T + b.
    # Fold the 1/HW of the average pool into the fc weights.
    w_fc = _pad_axis(_pad_axis(params["w_fc"].T / float(HW), Fp, 0),
                     NCp, 1).astype(jnp.bfloat16)                          # (Fp, NCp)
    # Per-block row-sum selector: pool[s, r] = 1 iff r // hw_tile == s.  Kept
    # f32 so it consumes the f32 feat accumulator directly (negligible FLOPs).
    pool = (jnp.arange(Bblk)[:, None] ==
            (jnp.arange(Mblk) // hw_tile)[None, :]).astype(jnp.float32)    # (Bblk, Mblk)

    # Explicit, generation-safe VMEM cap (v7x: 64 MiB physical, 32 MiB default).
    per_step = 2 * Mblk * K9C * 2 + Mblk * Fp * 4
    vmem_limit = int(min(64 << 20, max(16 << 20, 4 * per_step)))

    out = pl.pallas_call(
        finetuned_kernel,
        out_shape=jax.ShapeDtypeStruct((n_hw, Bpad, NCp), jnp.float32),
        grid_spec=pltpu.PrefetchScalarGridSpec(
            num_scalar_prefetch=0,
            grid=(n_bblocks, n_hw),
            in_specs=[
                pl.BlockSpec((1, Mblk, K9C), lambda b, h: (h, b, 0)),   # patch slab (pipelined)
                pl.BlockSpec((K9C, Fp), lambda b, h: (0, 0)),           # conv weights (resident)
                pl.BlockSpec((1, Fp), lambda b, h: (0, 0)),             # conv bias
                pl.BlockSpec((Bblk, Mblk), lambda b, h: (0, 0)),        # pooling selector
                pl.BlockSpec((Fp, NCp), lambda b, h: (0, 0)),           # fc weights (1/HW folded)
            ],
            out_specs=pl.BlockSpec((1, Bblk, NCp), lambda b, h: (h, b, 0)),
        ),
        compiler_params=pltpu.CompilerParams(
            dimension_semantics=("parallel", "parallel"),
            vmem_limit_bytes=vmem_limit),
    )(patches, w_conv, b_conv, pool, w_fc)

    # Sum the per-hw-tile partial logits, drop padding, add the fc bias.
    logits = out.sum(axis=0)[:B, :NC] + params["b_fc"]
    return logits


# ------------------------------ Reference ------------------------------------- #
def finetuned_reference(x_nchw, params):
    x_nhwc = jnp.transpose(x_nchw, (0, 2, 3, 1))
    patches = im2col_3x3(x_nhwc)
    feat = jnp.maximum(patches @ params["w_conv"] + params["b_conv"], 0.0)
    pooled = jnp.mean(feat, axis=1)                       # (B, F)
    return pooled @ params["w_fc"].T + params["b_fc"]


# -------------------------------- Main ----------------------------------------- #
if __name__ == "__main__":
    B, C, H, W = 2, 4, 16, 16
    input_dim = 32      # encoder feature dim
    num_classes = 10

    key = jax.random.PRNGKey(0)
    k_x, k_wc, k_bc, k_wf, k_bf = jax.random.split(key, 5)

    x = jax.random.normal(k_x, (B, C, H, W), dtype=jnp.float32)

    params = {
        # conv weight laid out as (kh*kw*C_in, F) to match the im2col patch order
        "w_conv": jax.random.normal(k_wc, (9 * C, input_dim), dtype=jnp.float32) * 0.1,
        "b_conv": jax.random.normal(k_bc, (1, input_dim), dtype=jnp.float32) * 0.1,
        # nn.Linear(input_dim, num_classes): weight (num_classes, input_dim)
        "w_fc": jax.random.normal(k_wf, (num_classes, input_dim), dtype=jnp.float32) * 0.1,
        "b_fc": jax.random.normal(k_bf, (1, num_classes), dtype=jnp.float32) * 0.1,
    }

    out = finetuned_forward(x, params)
    out = jax.block_until_ready(out)

    ref = finetuned_reference(x, params)
    assert out.shape == (B, num_classes)
    # bf16 matmul operands -> loosened tolerance vs the f32 reference.
    assert jnp.allclose(out, ref, atol=2e-2, rtol=2e-2), "mismatch vs reference"

    print("KERNEL_OK")
</pallas_src>

<mosaic_0001>
module attributes {stable_mosaic.version = 11 : i64} {
  func.func @finetuned_kernel(%arg0: i32, %arg1: i32, %arg2: memref<1x128x36xbf16, #tpu.memory_space<vmem>>, %arg3: memref<36x128xbf16, #tpu.memory_space<vmem>>, %arg4: memref<1x128xf32, #tpu.memory_space<vmem>>, %arg5: memref<2x128xf32, #tpu.memory_space<vmem>>, %arg6: memref<128x128xbf16, #tpu.memory_space<vmem>>, %arg7: memref<1x2x128xf32, #tpu.memory_space<vmem>>) attributes {dimension_semantics = [#tpu.dimension_semantics<parallel>, #tpu.dimension_semantics<parallel>], iteration_bounds = array<i64: 1, 4>, scalar_prefetch = 0 : i64, scratch_operands = 0 : i64, tpu.core_type = #tpu.core_type<tc>, window_params = [{transform_indices = @transform_0, window_bounds = array<i64: 1, 128, 36>}, {pipeline_mode = #tpu.pipeline_mode<synchronous>, transform_indices = @transform_1, window_bounds = array<i64: 36, 128>}, {pipeline_mode = #tpu.pipeline_mode<synchronous>, transform_indices = @transform_2, window_bounds = array<i64: 1, 128>}, {pipeline_mode = #tpu.pipeline_mode<synchronous>, transform_indices = @transform_3, window_bounds = array<i64: 2, 128>}, {pipeline_mode = #tpu.pipeline_mode<synchronous>, transform_indices = @transform_4, window_bounds = array<i64: 128, 128>}, {transform_indices = @transform_5, window_bounds = array<i64: 1, 2, 128>}]} {
    %c0 = arith.constant 0 : index
    %c0_0 = arith.constant 0 : index
    %c0_1 = arith.constant 0 : index
    %0 = vector.load %arg2[%c0, %c0_0, %c0_1] : memref<1x128x36xbf16, #tpu.memory_space<vmem>>, vector<1x128x36xbf16>
    %1 = vector.shape_cast %0 : vector<1x128x36xbf16> to vector<128x36xbf16>
    %c0_2 = arith.constant 0 : index
    %c0_3 = arith.constant 0 : index
    %2 = vector.load %arg3[%c0_2, %c0_3] : memref<36x128xbf16, #tpu.memory_space<vmem>>, vector<36x128xbf16>
    %cst = arith.constant dense<0.000000e+00> : vector<128x128xf32>
    %3 = tpu.matmul %1, %2, %cst {dimension_numbers = #tpu.dot_dimension_numbers<[1], [0], [0], [1], [0, 0, 1, 1], [], []>} : vector<128x36xbf16>, vector<36x128xbf16>, vector<128x128xf32> -> vector<128x128xf32>
    %c0_4 = arith.constant 0 : index
    %c0_5 = arith.constant 0 : index
    %4 = vector.load %arg4[%c0_4, %c0_5] : memref<1x128xf32, #tpu.memory_space<vmem>>, vector<1x128xf32>
    %5 = vector.broadcast %4 : vector<1x128xf32> to vector<128x128xf32>
    %6 = arith.addf %3, %5 : vector<128x128xf32>
    %cst_6 = arith.constant 0.000000e+00 : f32
    %7 = vector.broadcast %cst_6 : f32 to vector<128x128xf32>
    %8 = arith.maximumf %6, %7 : vector<128x128xf32>
    %c0_7 = arith.constant 0 : index
    %c0_8 = arith.constant 0 : index
    %9 = vector.load %arg5[%c0_7, %c0_8] : memref<2x128xf32, #tpu.memory_space<vmem>>, vector<2x128xf32>
    %cst_9 = arith.constant dense<0.000000e+00> : vector<2x128xf32>
    %10 = tpu.matmul %9, %8, %cst_9 {dimension_numbers = #tpu.dot_dimension_numbers<[1], [0], [0], [1], [0, 0, 1, 1], [], []>} : vector<2x128xf32>, vector<128x128xf32>, vector<2x128xf32> -> vector<2x128xf32>
    %11 = arith.truncf %10 : vector<2x128xf32> to vector<2x128xbf16>
    %c0_10 = arith.constant 0 : index
    %c0_11 = arith.constant 0 : index
    %12 = vector.load %arg6[%c0_10, %c0_11] : memref<128x128xbf16, #tpu.memory_space<vmem>>, vector<128x128xbf16>
    %cst_12 = arith.constant dense<0.000000e+00> : vector<2x128xf32>
    %13 = tpu.matmul %11, %12, %cst_12 {dimension_numbers = #tpu.dot_dimension_numbers<[1], [0], [0], [1], [0, 0, 1, 1], [], []>} : vector<2x128xbf16>, vector<128x128xbf16>, vector<2x128xf32> -> vector<2x128xf32>
    %c0_13 = arith.constant 0 : index
    %c0_14 = arith.constant 0 : index
    %c0_15 = arith.constant 0 : index
    %14 = vector.load %arg7[%c0_13, %c0_14, %c0_15] : memref<1x2x128xf32, #tpu.memory_space<vmem>>, vector<1x2x128xf32>
    %15 = vector.shape_cast %14 : vector<1x2x128xf32> to vector<2x128xf32>
    %16 = vector.shape_cast %13 : vector<2x128xf32> to vector<1x2x128xf32>
    tpu.vector_store %arg7[%c0_13, %c0_14, %c0_15], %16 {strides = array<i32>} : memref<1x2x128xf32, #tpu.memory_space<vmem>>, vector<1x2x128xf32>,
    return
  }
  func.func @transform_0(%arg0: i32, %arg1: i32) -> (i32, i32, i32) {
    %c0_i32 = arith.constant 0 : i32
    %c0_i32_0 = arith.constant 0 : i32
    return %arg1, %arg0, %c0_i32 : i32, i32, i32
  }
  func.func @transform_1(%arg0: i32, %arg1: i32) -> (i32, i32) {
    %c0_i32 = arith.constant 0 : i32
    %c0_i32_0 = arith.constant 0 : i32
    %c0_i32_1 = arith.constant 0 : i32
    return %c0_i32, %c0_i32_0 : i32, i32
  }
  func.func @transform_2(%arg0: i32, %arg1: i32) -> (i32, i32) {
    %c0_i32 = arith.constant 0 : i32
    %c0_i32_0 = arith.constant 0 : i32
    %c0_i32_1 = arith.constant 0 : i32
    return %c0_i32, %c0_i32_0 : i32, i32
  }
  func.func @transform_3(%arg0: i32, %arg1: i32) -> (i32, i32) {
    %c0_i32 = arith.constant 0 : i32
    %c0_i32_0 = arith.constant 0 : i32
    %c0_i32_1 = arith.constant 0 : i32
    return %c0_i32, %c0_i32_0 : i32, i32
  }
  func.func @transform_4(%arg0: i32, %arg1: i32) -> (i32, i32) {
    %c0_i32 = arith.constant 0 : i32
    %c0_i32_0 = arith.constant 0 : i32
    %c0_i32_1 = arith.constant 0 : i32
    return %c0_i32, %c0_i32_0 : i32, i32
  }
  func.func @transform_5(%arg0: i32, %arg1: i32) -> (i32, i32, i32) {
    %c0_i32 = arith.constant 0 : i32
    %c0_i32_0 = arith.constant 0 : i32
    return %arg1, %arg0, %c0_i32 : i32, i32, i32
  }
}

</mosaic_0001>

<llo_original>
// kernel: tpu_custom_call.1
$region0: #{tpu_custom_call.1}
  #allocation0 [shape = 'u32[]', space=smem, size = 0x4, offset = 0x4, fixed_abs, tag = 'smem constant byte address 0x4 - core index']
  #allocation1 [shape = 'u32[72,128]{1,0:T(1,128)}', space=vmem, size = 0x9000, scoped, tag = 'internal scratch']
  %s0 = inlined_call_operand.vmem [shape: bf16[4,128,36], index: 0, kind: input, shape index: {}]
  %s1 = inlined_call_operand.vmem [shape: bf16[36,128], index: 1, kind: input, shape index: {}]
  %s2 = inlined_call_operand.vmem [shape: f32[1,128], index: 2, kind: input, shape index: {}]
  %s3 = inlined_call_operand.vmem [shape: f32[2,128], index: 3, kind: input, shape index: {}]
  %s4 = inlined_call_operand.vmem [shape: bf16[128,128], index: 4, kind: input, shape index: {}]
  %s5 = inlined_call_operand.hbm [shape: f32[4,2,128], index: 5, kind: output, shape index: {}]
  %s6 = sld [smem:[#allocation0]]
  $region53: #{tpu_custom_call.1} parent=0
    _
  %s8 = ssub.s32 1, %s6
  %s9 = scalar_select 0, %s8, %s6
  $region1: #{tpu_custom_call.1} parent=0
    #allocation2 [shape = 'u8[2048]{0}', space=vmem, size = 0x800, scoped, tag = 'output window, operand 0']
    #allocation3 [shape = 's32[2]{0}', space=sflag, size = 0x8, scoped, tag = 'scoped memory for tpu_custom_call.1']
    %10 = vsyncpa [#allocation3], 0
    %s11 = scalar_lea.sflag [#allocation3], 1
    %12 = vsyncpa %s11, 0
    loop: start=0, step=1, limit=6
    $region2: #{tpu_custom_call.1} parent=1 // loop_pre_header
      _
    $region3: #{tpu_custom_call.1} parent=1 // loop_header
      %s14 = sphi 0, %s18
      %p15 = scmp.ge.s32.totalorder %s14, 6
      %s21 = sphi 0, %s33
      %s22 = sphi 0, %s29
      %s23 = sphi 0, %s21
      %s24 = sphi 0, %s22
      %s25 = sphi 0, %s23
      %s26 = sphi 0, %s24
      %s38 = sphi 0, %s40
      %s41 = sphi 0, %s38
      %s42 = sphi 0, %s41
      %s58 = sphi 0, %s42
      %s62 = sphi 0, %s62
      %s64 = sphi 0, %s62
      %s65 = sphi 0, %s64
      %s79 = sphi 0, %s65
      %s83 = sphi 0, %s83
      %s85 = sphi 0, %s83
      %s86 = sphi 0, %s85
      %s100 = sphi 0, %s86
      %s104 = sphi 0, %s104
      %s106 = sphi 0, %s104
      %s107 = sphi 0, %s106
      %s121 = sphi 0, %s107
      %s125 = sphi 0, %s125
      %s127 = sphi 0, %s125
      %s128 = sphi 0, %s127
      %s142 = sphi 0, %s128
      %s150 = sphi 0, %s152
      %s153 = sphi 0, %s150
      %s154 = sphi 0, %s153
      %s170 = sphi 0, %s154
    $region4: #{tpu_custom_call.1} parent=1 // loop_header_branch
      %17 = sbr.rel (%p15) target = $region8
    $region5: #{tpu_custom_call.1} parent=1 // loop_body
      %s19 = ssub.s32 %s14, 1
      %s20 = ssub.s32 %s14, 2
      %s27 = sadd.s32 1, %s22
      %p28 = scmp.ge.s32.totalorder %s27, 4
      %s29 = scalar_select %p28, 0, %s27
      %s30 = sadd.s32 1, %s21
      %s31 = scalar_select %p28, %s30, %s21
      %p32 = scmp.ge.s32.totalorder %s31, 1
      %s33 = scalar_select %p32, 0, %s31
      %s34 = ssub.s32 %s22, %s29
      %s35 = ssub.s32 %s21, %s33
      %s36 = sor.u32 %s34, %s35
      %p37 = scmp.eq.s32.totalorder %s36, 0
      %s39 = sadd.s32 %s38, 1
      %s40 = scalar_select %p37, %s38, %s39
      %p43 = pneg %p37
      %p44 = scmp.eq.s32.totalorder %s14, 3
      %p45 = por %p43, %p44
      %p46 = scmp.ne.s32.totalorder %s38, %s41
      %p47 = scmp.eq.s32.totalorder %s14, 0
      %p48 = por %p46, %p47
      %p49 = scmp.ne.s32.totalorder %s38, %s41
      %p50 = scmp.eq.s32.totalorder %s19, 3
      %p51 = por %p49, %p50
      %p52 = scmp.ne.s32.totalorder %s41, %s42
      %p53 = scmp.eq.s32.totalorder %s19, 0
      %p54 = por %p52, %p53
      %p55 = scmp.ne.s32.totalorder %s41, %s42
      %p56 = scmp.eq.s32.totalorder %s20, 3
      %p57 = por %p55, %p56
      %p59 = scmp.ne.s32.totalorder %s42, %s58
      %p60 = scmp.eq.s32.totalorder %s20, 0
      %p61 = por %p59, %p60
      %s63 = sadd.s32 %s62, 1
      %p66 = scmp.eq.s32.totalorder %s14, 3
      %p67 = scmp.ne.s32.totalorder %s62, %s64
      %p68 = scmp.eq.s32.totalorder %s14, 0
      %p69 = por %p67, %p68
      %p70 = scmp.ne.s32.totalorder %s62, %s64
      %p71 = scmp.eq.s32.totalorder %s19, 3
      %p72 = por %p70, %p71
      %p73 = scmp.ne.s32.totalorder %s64, %s65
      %p74 = scmp.eq.s32.totalorder %s19, 0
      %p75 = por %p73, %p74
      %p76 = scmp.ne.s32.totalorder %s64, %s65
      %p77 = scmp.eq.s32.totalorder %s20, 3
      %p78 = por %p76, %p77
      %p80 = scmp.ne.s32.totalorder %s65, %s79
      %p81 = scmp.eq.s32.totalorder %s20, 0
      %p82 = por %p80, %p81
      %s84 = sadd.s32 %s83, 1
      %p87 = scmp.eq.s32.totalorder %s14, 3
      %p88 = scmp.ne.s32.totalorder %s83, %s85
      %p89 = scmp.eq.s32.totalorder %s14, 0
      %p90 = por %p88, %p89
      %p91 = scmp.ne.s32.totalorder %s83, %s85
      %p92 = scmp.eq.s32.totalorder %s19, 3
      %p93 = por %p91, %p92
      %p94 = scmp.ne.s32.totalorder %s85, %s86
      %p95 = scmp.eq.s32.totalorder %s19, 0
      %p96 = por %p94, %p95
      %p97 = scmp.ne.s32.totalorder %s85, %s86
      %p98 = scmp.eq.s32.totalorder %s20, 3
      %p99 = por %p97, %p98
      %p101 = scmp.ne.s32.totalorder %s86, %s100
      %p102 = scmp.eq.s32.totalorder %s20, 0
      %p103 = por %p101, %p102
      %s105 = sadd.s32 %s104, 1
      %p108 = scmp.eq.s32.totalorder %s14, 3
      %p109 = scmp.ne.s32.totalorder %s104, %s106
      %p110 = scmp.eq.s32.totalorder %s14, 0
      %p111 = por %p109, %p110
      %p112 = scmp.ne.s32.totalorder %s104, %s106
      %p113 = scmp.eq.s32.totalorder %s19, 3
      %p114 = por %p112, %p113
      %p115 = scmp.ne.s32.totalorder %s106, %s107
      %p116 = scmp.eq.s32.totalorder %s19, 0
      %p117 = por %p115, %p116
      %p118 = scmp.ne.s32.totalorder %s106, %s107
      %p119 = scmp.eq.s32.totalorder %s20, 3
      %p120 = por %p118, %p119
      %p122 = scmp.ne.s32.totalorder %s107, %s121
      %p123 = scmp.eq.s32.totalorder %s20, 0
      %p124 = por %p122, %p123
      %s126 = sadd.s32 %s125, 1
      %p129 = scmp.eq.s32.totalorder %s14, 3
      %p130 = scmp.ne.s32.totalorder %s125, %s127
      %p131 = scmp.eq.s32.totalorder %s14, 0
      %p132 = por %p130, %p131
      %p133 = scmp.ne.s32.totalorder %s125, %s127
      %p134 = scmp.eq.s32.totalorder %s19, 3
      %p135 = por %p133, %p134
      %p136 = scmp.ne.s32.totalorder %s127, %s128
      %p137 = scmp.eq.s32.totalorder %s19, 0
      %p138 = por %p136, %p137
      %p139 = scmp.ne.s32.totalorder %s127, %s128
      %p140 = scmp.eq.s32.totalorder %s20, 3
      %p141 = por %p139, %p140
      %p143 = scmp.ne.s32.totalorder %s128, %s142
      %p144 = scmp.eq.s32.totalorder %s20, 0
      %p145 = por %p143, %p144
      %s146 = ssub.s32 %s22, %s29
      %s147 = ssub.s32 %s21, %s33
      %s148 = sor.u32 %s146, %s147
      %p149 = scmp.eq.s32.totalorder %s148, 0
      %s151 = sadd.s32 %s150, 1
      %s152 = scalar_select %p149, %s150, %s151
      %p155 = pneg %p149
      %p156 = scmp.eq.s32.totalorder %s14, 3
      %p157 = por %p155, %p156
      %p158 = scmp.ne.s32.totalorder %s150, %s153
      %p159 = scmp.eq.s32.totalorder %s14, 0
      %p160 = por %p158, %p159
      %p161 = scmp.ne.s32.totalorder %s150, %s153
      %p162 = scmp.eq.s32.totalorder %s19, 3
      %p163 = por %p161, %p162
      %p164 = scmp.ne.s32.totalorder %s153, %s154
      %p165 = scmp.eq.s32.totalorder %s19, 0
      %p166 = por %p164, %p165
      %p167 = scmp.ne.s32.totalorder %s153, %s154
      %p168 = scmp.eq.s32.totalorder %s20, 3
      %p169 = por %p167, %p168
      %p171 = scmp.ne.s32.totalorder %s154, %s170
      %p172 = scmp.eq.s32.totalorder %s20, 0
      %p173 = por %p171, %p172
      %p174 = scmp.le.s32.totalorder 1, %s14
      %p175 = scmp.lt.s32.totalorder %s14, 5
      %p176 = pnand %p174, %p175
      %p177 = pneg %p176
      // Predicated region
      $region9: #{tpu_custom_call.1} parent=5 // pred_check
        _
      $region10: #{tpu_custom_call.1} parent=5 // pred_check_branch
        %179 = sbr.rel (%p176) target = $region12
      $region11: #{tpu_custom_call.1} parent=5 // pred_region
        %s180 = ssub.s32 %s14, 1
        // Predicated region
        $region13: #{tpu_custom_call.1} parent=11 // pred_check
          %p181 = pneg %p75
        $region14: #{tpu_custom_call.1} parent=11 // pred_check_branch
          %183 = sbr.rel (%p181) target = $region16
        $region15: #{tpu_custom_call.1} parent=11 // pred_region
          _
        $region16: #{tpu_custom_call.1} parent=11 // pred_fallthru
          _
        // Predicated region
        $region17: #{tpu_custom_call.1} parent=11 // pred_check
          %p184 = pneg %p96
        $region18: #{tpu_custom_call.1} parent=11 // pred_check_branch
          %186 = sbr.rel (%p184) target = $region20
        $region19: #{tpu_custom_call.1} parent=11 // pred_region
          _
        $region20: #{tpu_custom_call.1} parent=11 // pred_fallthru
          _
        // Predicated region
        $region21: #{tpu_custom_call.1} parent=11 // pred_check
          %p187 = pneg %p117
        $region22: #{tpu_custom_call.1} parent=11 // pred_check_branch
          %189 = sbr.rel (%p187) target = $region24
        $region23: #{tpu_custom_call.1} parent=11 // pred_region
          _
        $region24: #{tpu_custom_call.1} parent=11 // pred_fallthru
          _
        // Predicated region
        $region25: #{tpu_custom_call.1} parent=11 // pred_check
          %p190 = pneg %p138
        $region26: #{tpu_custom_call.1} parent=11 // pred_check_branch
          %192 = sbr.rel (%p190) target = $region28
        $region27: #{tpu_custom_call.1} parent=11 // pred_region
          _
        $region28: #{tpu_custom_call.1} parent=11 // pred_fallthru
          _
      $region12: #{tpu_custom_call.1} parent=5 // pred_fallthru
        _
      %p193 = scmp.lt.s32.totalorder %s14, 4
      // Predicated region
      $region29: #{tpu_custom_call.1} parent=5 // pred_check
        %p194 = pneg %p193
      $region30: #{tpu_custom_call.1} parent=5 // pred_check_branch
        %196 = sbr.rel (%p194) target = $region32
      $region31: #{tpu_custom_call.1} parent=5 // pred_region
        // Predicated region
        $region33: #{tpu_custom_call.1} parent=31 // pred_check
          %p197 = pneg %p48
        $region34: #{tpu_custom_call.1} parent=31 // pred_check_branch
          %199 = sbr.rel (%p197) target = $region36
        $region35: #{tpu_custom_call.1} parent=31 // pred_region
          %s200 = smul.u32 16, %s21
          %p201 = scmp.lt.s32.totalorder %s22, 3
          %s202 = scalar_select %p201, %s22, 3
          %p203 = scmp.lt.s32.totalorder %s200, 15
          %s204 = scalar_select %p203, %s200, 15
          %s205 = smul.addr %s202, 16
          %s206 = sadd.s32 %s204, %s205
          %s207 = smul.addr %s206, 4
          %s208 = scalar_lea.vmem %s0, %s207
          %s209 = smul.u32 16, %s21
        $region36: #{tpu_custom_call.1} parent=31 // pred_fallthru
          _
      $region32: #{tpu_custom_call.1} parent=5 // pred_fallthru
        _
      %p210 = scmp.le.s32.totalorder 1, %s14
      %p211 = scmp.lt.s32.totalorder %s14, 5
      %p212 = pnand %p210, %p211
      %p213 = pneg %p212
      // Predicated region
      $region37: #{tpu_custom_call.1} parent=5 // pred_check
        _
      $region38: #{tpu_custom_call.1} parent=5 // pred_check_branch
        %215 = sbr.rel (%p212) target = $region40
      $region39: #{tpu_custom_call.1} parent=5 // pred_region
        %s216 = ssub.s32 %s14, 1
        %s217 = smul.u32 16, %s23
        %p218 = scmp.lt.s32.totalorder %s24, 3
        %s219 = scalar_select %p218, %s24, 3
        %p220 = scmp.lt.s32.totalorder %s217, 15
        %s221 = scalar_select %p220, %s217, 15
        %s222 = smul.addr %s219, 16
        %s223 = sadd.s32 %s221, %s222
        %s224 = smul.addr %s223, 4
        %s225 = scalar_lea.vmem %s0, %s224
        %p226 = pneg %p54
        %p227 = pneg %p51
        %p228 = pneg %p75
        %p229 = pneg %p72
        %p230 = pneg %p96
        %p231 = pneg %p93
        %p232 = pneg %p117
        %p233 = pneg %p114
        %p234 = pneg %p138
        %p235 = pneg %p135
        %p236 = pneg %p166
        %p237 = pneg %p163
        %s238 = sand.u32 %s153, 1
        %s239 = scalar_lea.sflag [#allocation3], %s238
        %s240 = sand.u32 %s153, 1
        %s241 = smul.addr %s240, 2
        %s242 = scalar_lea.vmem [#allocation2], %s241
        %s243 = smul.u32 16, %s23
        %p244 = scmp.lt.s32.totalorder %s24, 3
        %s245 = scalar_select %p244, %s24, 3
        %p246 = scmp.lt.s32.totalorder %s243, 15
        %s247 = scalar_select %p246, %s243, 15
        %s248 = smul.addr %s245, 16
        %s249 = sadd.s32 %s247, %s248
        %s250 = smul.addr %s249, 4
        %s251 = scalar_lea.vmem %s0, %s250
        %s252 = smul.u32 16, %s23
        %v254 = vld [vmem:[%s251] sm:$0xf]
        %v255 = vld [vmem:[%s251 + $0x4] sm:$0xf]
        %v256 = vld [vmem:[%s251 + $0x8] sm:$0xf]
        %v257 = vld [vmem:[%s251 + $0xc] sm:$0xf]
        %v258 = vld [vmem:[%s251 + $0x10] sm:$0xf]
        %v259 = vld [vmem:[%s251 + $0x14] sm:$0xf]
        %v260 = vld [vmem:[%s251 + $0x18] sm:$0xf]
        %v261 = vld [vmem:[%s251 + $0x1c] sm:$0xf]
        %v262 = vld [vmem:[%s251 + $0x20] sm:$0xf]
        %v263 = vld [vmem:[%s251 + $0x24] sm:$0xf]
        %v264 = vld [vmem:[%s251 + $0x28] sm:$0xf]
        %v265 = vld [vmem:[%s251 + $0x2c] sm:$0xf]
        %v266 = vld [vmem:[%s251 + $0x30] sm:$0xf]
        %v267 = vld [vmem:[%s251 + $0x34] sm:$0xf]
        %v268 = vld [vmem:[%s251 + $0x38] sm:$0xf]
        %v269 = vld [vmem:[%s251 + $0x3c] sm:$0xf]
        %v270 = vld [vmem:[%s1] sm:$0xf]
        %v271 = vld [vmem:[%s1 + $0x4] sm:$0xf]
        %v272 = vld [vmem:[%s1 + $0x8] sm:$0xf]
        %v273 = vld [vmem:[%s1 + $0xc] sm:$0xf]
        %v274 = vld [vmem:[%s1 + $0x10] sm:$0x3]
        %v275 = vld [vmem:[%s2] sm:$0x1]
        %v277 = vperm.slane %v275, 0
        %v295 = vunpack.c.l.b16 %v254
        %v296 = vunpack.c.l.b16 %v255
        %v297 = vunpack.c.l.b16 %v256
        %v298 = vunpack.c.l.b16 %v257
        %v299 = vunpack.c.l.b16 %v258
        %v300 = vunpack.c.l.b16 %v259
        %v301 = vunpack.c.l.b16 %v260
        %v302 = vunpack.c.l.b16 %v261
        %v303 = vunpack.c.l.b16 %v262
        %v304 = vunpack.c.l.b16 %v263
        %v305 = vunpack.c.l.b16 %v264
        %v306 = vunpack.c.l.b16 %v265
        %v307 = vunpack.c.l.b16 %v266
        %v308 = vunpack.c.l.b16 %v267
        %v309 = vunpack.c.l.b16 %v268
        %v310 = vunpack.c.l.b16 %v269
        %v311 = vpack.c.b16 %v296, %v295
        %v312 = vpack.c.b16 %v298, %v297
        %v313 = vpack.c.b16 %v300, %v299
        %v314 = vpack.c.b16 %v302, %v301
        %v315 = vpack.c.b16 %v304, %v303
        %v316 = vpack.c.b16 %v306, %v305
        %v317 = vpack.c.b16 %v308, %v307
        %v318 = vpack.c.b16 %v310, %v309
        %v324 = vunpack.c.l.b16 %v270
        %v325 = vunpack.c.l.b16 %v271
        %v326 = vunpack.c.l.b16 %v272
        %v327 = vunpack.c.l.b16 %v273
        %v328 = vunpack.c.l.b16 %v274
        %v329 = vpack.c.b16 %v325, %v324
        %v330 = vpack.c.b16 %v327, %v326
        %v331 = vpack.c.b16 %v328, %v328
        %vm334 = vcmask 293888
        %v336 = vsel %vm334, %v311, 0
        %v339 = vsel %vm334, %v312, 0
        %v342 = vsel %vm334, %v313, 0
        %v345 = vsel %vm334, %v314, 0
        %v348 = vsel %vm334, %v315, 0
        %v351 = vsel %vm334, %v316, 0
        %v354 = vsel %vm334, %v317, 0
        %v357 = vsel %vm334, %v318, 0
        %vm359 = vcmask 1041408
        %v361 = vsel %vm359, %v331, 0
        %363 = vmatpush.bf16.msra.mxu0 0
        %364 = vmatpush.bf16.msra.mxu0 0
        %365 = vmatpush.bf16.msra.mxu0 0
        %366 = vmatpush.bf16.msra.mxu0 0
        %367 = vmatpush.bf16.msra.mxu0 0
        %368 = vmatpush.bf16.msra.mxu0 %v361
        %369 = vmatpush.bf16.msra.mxu0 %v330
        %370 = vmatpush.bf16.msra.mxu0 %v329
        %371 = vmatmul.bf16.gmra.mxu0 %v336
        %v372 = vpop.f32.mrf.mxu0
        %v373 = vadd.f32 %v277, %v372
        %v374 = vpop.f32.mrf.mxu0
        %v375 = vadd.f32 %v277, %v374
        %376 = vmatmul.bf16.gmra.mxu0 %v339
        %v377 = vpop.f32.mrf.mxu0
        %v378 = vadd.f32 %v277, %v377
        %v379 = vpop.f32.mrf.mxu0
        %v380 = vadd.f32 %v277, %v379
        %381 = vmatmul.bf16.gmra.mxu0 %v342
        %v382 = vpop.f32.mrf.mxu0
        %v383 = vadd.f32 %v277, %v382
        %v384 = vpop.f32.mrf.mxu0
        %v385 = vadd.f32 %v277, %v384
        %386 = vmatmul.bf16.gmra.mxu0 %v345
        %v387 = vpop.f32.mrf.mxu0
        %v388 = vadd.f32 %v277, %v387
        %v389 = vpop.f32.mrf.mxu0
        %v390 = vadd.f32 %v277, %v389
        %391 = vmatmul.bf16.gmra.mxu0 %v348
        %v392 = vpop.f32.mrf.mxu0
        %v393 = vadd.f32 %v277, %v392
        %v394 = vpop.f32.mrf.mxu0
        %v395 = vadd.f32 %v277, %v394
        %396 = vmatmul.bf16.gmra.mxu0 %v351
        %v397 = vpop.f32.mrf.mxu0
        %v398 = vadd.f32 %v277, %v397
        %v399 = vpop.f32.mrf.mxu0
        %v400 = vadd.f32 %v277, %v399
        %401 = vmatmul.bf16.gmra.mxu0 %v354
        %v402 = vpop.f32.mrf.mxu0
        %v403 = vadd.f32 %v277, %v402
        %v404 = vpop.f32.mrf.mxu0
        %v405 = vadd.f32 %v277, %v404
        %406 = vmatmul.bf16.gmra.mxu0 %v357
        %v407 = vpop.f32.mrf.mxu0
        %v408 = vadd.f32 %v277, %v407
        %v409 = vpop.f32.mrf.mxu0
        %v410 = vadd.f32 %v277, %v409
        %411 = vdwg.mxu0
        %v412 = vmax.f32 %v373, 0.0
        %v413 = vmax.f32 %v375, 0.0
        %v414 = vmax.f32 %v378, 0.0
        %v415 = vmax.f32 %v380, 0.0
        %v416 = vmax.f32 %v383, 0.0
        %v417 = vmax.f32 %v385, 0.0
        %v418 = vmax.f32 %v388, 0.0
        %v419 = vmax.f32 %v390, 0.0
        %v420 = vmax.f32 %v393, 0.0
        %v421 = vmax.f32 %v395, 0.0
        %v422 = vmax.f32 %v398, 0.0
        %v423 = vmax.f32 %v400, 0.0
        %v424 = vmax.f32 %v403, 0.0
        %v425 = vmax.f32 %v405, 0.0
        %v426 = vmax.f32 %v408, 0.0
        %v427 = vmax.f32 %v410, 0.0
        %v428 = vld [vmem:[%s3] sm:$0x3]
        %429 = vmatpush.msra.mxu0 %v427
        %430 = vmatpush.msra.mxu0 %v426
        %431 = vmatpush.msra.mxu0 %v425
        %432 = vmatpush.msra.mxu0 %v424
        %433 = vmatpush.msra.mxu0 %v423
        %434 = vmatpush.msra.mxu0 %v422
        %435 = vmatpush.msra.mxu0 %v421
        %436 = vmatpush.msra.mxu0 %v420
        %437 = vmatpush.msra.mxu0 %v419
        %438 = vmatpush.msra.mxu0 %v418
        %439 = vmatpush.msra.mxu0 %v417
        %440 = vmatpush.msra.mxu0 %v416
        %441 = vmatpush.msra.mxu0 %v415
        %442 = vmatpush.msra.mxu0 %v414
        %443 = vmatpush.msra.mxu0 %v413
        %444 = vmatpush.msra.mxu0 %v412
        %445 = vmatmul.f32.gmra.mxu0 %v428
        %v446 = vpop.f32.mrf.mxu0
        %v447 = vadd.f32 0.0, %v446
        %448 = vdwg.mxu0
        %v449 = vpack.c.bf16 %v447, %v447
        %v450 = vld [vmem:[%s4] sm:$0xf]
        %v451 = vld [vmem:[%s4 + $0x4] sm:$0xf]
        %v452 = vld [vmem:[%s4 + $0x8] sm:$0xf]
        %v453 = vld [vmem:[%s4 + $0xc] sm:$0xf]
        %v454 = vld [vmem:[%s4 + $0x10] sm:$0xf]
        %v455 = vld [vmem:[%s4 + $0x14] sm:$0xf]
        %v456 = vld [vmem:[%s4 + $0x18] sm:$0xf]
        %v457 = vld [vmem:[%s4 + $0x1c] sm:$0xf]
        %v458 = vld [vmem:[%s4 + $0x20] sm:$0xf]
        %v459 = vld [vmem:[%s4 + $0x24] sm:$0xf]
        %v460 = vld [vmem:[%s4 + $0x28] sm:$0xf]
        %v461 = vld [vmem:[%s4 + $0x2c] sm:$0xf]
        %v462 = vld [vmem:[%s4 + $0x30] sm:$0xf]
        %v463 = vld [vmem:[%s4 + $0x34] sm:$0xf]
        %v464 = vld [vmem:[%s4 + $0x38] sm:$0xf]
        %v465 = vld [vmem:[%s4 + $0x3c] sm:$0xf]
        %v482 = vunpack.c.l.b16 %v450
        %v483 = vunpack.c.l.b16 %v451
        %v484 = vunpack.c.l.b16 %v452
        %v485 = vunpack.c.l.b16 %v453
        %v486 = vunpack.c.l.b16 %v454
        %v487 = vunpack.c.l.b16 %v455
        %v488 = vunpack.c.l.b16 %v456
        %v489 = vunpack.c.l.b16 %v457
        %v490 = vunpack.c.l.b16 %v458
        %v491 = vunpack.c.l.b16 %v459
        %v492 = vunpack.c.l.b16 %v460
        %v493 = vunpack.c.l.b16 %v461
        %v494 = vunpack.c.l.b16 %v462
        %v495 = vunpack.c.l.b16 %v463
        %v496 = vunpack.c.l.b16 %v464
        %v497 = vunpack.c.l.b16 %v465
        %v498 = vpack.c.b16 %v483, %v482
        %v499 = vpack.c.b16 %v485, %v484
        %v500 = vpack.c.b16 %v487, %v486
        %v501 = vpack.c.b16 %v489, %v488
        %v502 = vpack.c.b16 %v491, %v490
        %v503 = vpack.c.b16 %v493, %v492
        %v504 = vpack.c.b16 %v495, %v494
        %v505 = vpack.c.b16 %v497, %v496
        %514 = vmatpush.bf16.msra.mxu0 %v505
        %515 = vmatpush.bf16.msra.mxu0 %v504
        %516 = vmatpush.bf16.msra.mxu0 %v503
        %517 = vmatpush.bf16.msra.mxu0 %v502
        %518 = vmatpush.bf16.msra.mxu0 %v501
        %519 = vmatpush.bf16.msra.mxu0 %v500
        %520 = vmatpush.bf16.msra.mxu0 %v499
        %521 = vmatpush.bf16.msra.mxu0 %v498
        %522 = vmatmul.bf16.gmra.mxu0 %v449
        %v523 = vpop.f32.mrf.mxu0
        %v524 = vadd.f32 0.0, %v523
        %v525 = vpop.f32.mrf.mxu0
        %526 = vdwg.mxu0
        %527 = vst [vmem:[%s242] sm:$0x3] %v524
        %s528 = sand.u32 %s153, 1
        %s529 = scalar_lea.sflag [#allocation3], %s528
        %s530 = sand.u32 %s153, 1
        %s531 = smul.addr %s530, 2
        %s532 = scalar_lea.vmem [#allocation2], %s531
        // Predicated region
        $region41: #{tpu_custom_call.1} parent=39 // pred_check
          %p533 = pneg %p163
        $region42: #{tpu_custom_call.1} parent=39 // pred_check_branch
          %535 = sbr.rel (%p533) target = $region44
        $region43: #{tpu_custom_call.1} parent=39 // pred_region
          %537 = vsyncadd %s529, 0
          %s538 = sadd.s32 %s23, %s24
          %s539 = smul.addr %s538, 2
          %s540 = scalar_lea.hbm %s5, %s539
          %s542 = sshll.u32 %s532, 4
          %s543 = int_to_ptr.vmem [resolvable:$true] %s542
          %s544 = sshll.u32 %s540, 4
          %s545 = int_to_ptr.hbm [resolvable:$true] %s544
          %547 = dma.vmem_to_hbm [thread:$0]  %s543, 32, %s545, %s529
        $region44: #{tpu_custom_call.1} parent=39 // pred_fallthru
          _
      $region40: #{tpu_custom_call.1} parent=5 // pred_fallthru
        _
      %p548 = scmp.le.s32.totalorder 2, %s14
      // Predicated region
      $region45: #{tpu_custom_call.1} parent=5 // pred_check
        %p549 = pneg %p548
      $region46: #{tpu_custom_call.1} parent=5 // pred_check_branch
        %551 = sbr.rel (%p549) target = $region48
      $region47: #{tpu_custom_call.1} parent=5 // pred_region
        %s552 = ssub.s32 %s14, 2
        // Predicated region
        $region49: #{tpu_custom_call.1} parent=47 // pred_check
          %p553 = pneg %p169
        $region50: #{tpu_custom_call.1} parent=47 // pred_check_branch
          %555 = sbr.rel (%p553) target = $region52
        $region51: #{tpu_custom_call.1} parent=47 // pred_region
          %s556 = sand.u32 %s154, 1
          %s557 = scalar_lea.sflag [#allocation3], %s556
          %s558 = sand.u32 %s154, 1
          %s559 = smul.addr %s558, 2
          %s560 = scalar_lea.vmem [#allocation2], %s559
          %562 = dma.done %s557, 32
        $region52: #{tpu_custom_call.1} parent=47 // pred_fallthru
          _
      $region48: #{tpu_custom_call.1} parent=5 // pred_fallthru
        _
    $region6: #{tpu_custom_call.1} parent=1 // loop_footer
      %s18 = sadd.s32 1, %s14
    $region7: #{tpu_custom_call.1} parent=1 // loop_footer_branch
      %13 = sbr.rel target = $region3
    $region8: #{tpu_custom_call.1} parent=1 // loop_exit
      _
    %563 = vsyncpa [#allocation3], 1
    %s564 = scalar_lea.sflag [#allocation3], 1
    %565 = vsyncpa %s564, 1

</llo_original>
